<compile_context>
chip_gen: v7x
topology: tpu7x:2x2x1
jax: 0.10.0
libtpu: 0.0.40
codegen_flags: <defaults>
</compile_context>

<pallas_src>
import functools

import jax
import jax.numpy as jnp
from jax.experimental import pallas as pl
from jax.experimental.pallas import tpu as pltpu

EPS = 1e-5  # torch.nn.InstanceNorm2d default eps

_TARGET_BLOCK_BYTES = 1 << 20       # ~1 MiB per input buffer (~85% HBM roofline)
_MAX_FUSED_BLOCK_BYTES = 2 << 20    # above this a pack-row block is too big -> chunk
_VMEM_LIMIT_BYTES = 32 * 1024 * 1024


def _sublane_pack(dtype) -> int:
    """Rows per packed sublane group: 8 for f32, 16 for bf16, 32 for int8/fp8."""
    return max(8, 32 // jnp.dtype(dtype).itemsize)


def _num_tensorcores() -> int:
    try:
        return max(1, int(getattr(jax.devices()[0], "num_cores", 1) or 1))
    except Exception:  # pragma: no cover - defensive
        return 1


def _choose_block_rows(num_rows, cols, itemsize, pack, num_cores):
    """Rows per block: multiple of the dtype pack, ~_TARGET_BLOCK_BYTES per buffer."""
    tb = max(1, _TARGET_BLOCK_BYTES // max(1, cols * itemsize))
    tb = max(pack, (tb // pack) * pack)
    if tb < num_rows:
        return tb
    # Whole row axis fits in one block.
    min_blocks = 2 * num_cores  # >= 2 pipelined grid steps per TensorCore
    if num_cores > 1 and num_rows >= min_blocks * pack:
        tb = (pl.cdiv(num_rows, min_blocks) // pack) * pack
        return max(pack, tb)
    return num_rows  # single full-extent block; no gratuitous splitting on 1-TC chips


# ----------------------------------------------------------------------------
# Fused path: whole instance row resident in one block.
# ----------------------------------------------------------------------------
def _adain_fused_kernel(ag_ref, x_ref, o_ref, *, inv_hw):
    # ag_ref: (TB, 2) f32 -> [:, 0] = alpha, [:, 1] = gamma.
    # x_ref / o_ref: (TB, HWp) lane-dense tiles (HWp = H*W padded to 128).
    x = x_ref[...].astype(jnp.float32)
    mean = jnp.sum(x, axis=-1, keepdims=True) * inv_hw          # (TB, 1)
    ex2 = jnp.sum(x * x, axis=-1, keepdims=True) * inv_hw       # (TB, 1)
    var = jnp.maximum(ex2 - mean * mean, 0.0)                   # clamp cancellation
    inv_std = jax.lax.rsqrt(var + EPS)                          # EUP, per row
    a = ag_ref[:, 0:1]
    g = ag_ref[:, 1:2]
    scale = a * inv_std                                         # (TB, 1)
    shift = g - mean * scale                                    # (TB, 1)
    o_ref[...] = (x * scale + shift).astype(o_ref.dtype)        # one FMA pass


# ----------------------------------------------------------------------------
# Chunked path: large H*W -> spatial-chunk reduction + separate normalize sweep.
# ----------------------------------------------------------------------------
def _stats_kernel(x_ref, s1_ref, s2_ref):
    # x_ref: (TB, TC); s1/s2: (TB, 1) f32, resident across the chunk axis.
    j = pl.program_id(1)

    @pl.when(j == 0)
    def _():
        s1_ref[...] = jnp.zeros_like(s1_ref)
        s2_ref[...] = jnp.zeros_like(s2_ref)

    x = x_ref[...].astype(jnp.float32)
    s1_ref[...] += jnp.sum(x, axis=-1, keepdims=True)
    s2_ref[...] += jnp.sum(x * x, axis=-1, keepdims=True)


def _norm_kernel(ss_ref, x_ref, o_ref):
    # ss_ref: (TB, 2) f32 -> [:, 0] = scale, [:, 1] = shift.
    x = x_ref[...].astype(jnp.float32)
    scale = ss_ref[:, 0:1]
    shift = ss_ref[:, 1:2]
    o_ref[...] = (x * scale + shift).astype(o_ref.dtype)


def adain(x, alpha, gamma, *, force_chunked=False, chunk_cols=None):
    """x: (N, C, H, W); alpha, gamma: (N, C, 1, 1). Returns (N, C, H, W)."""
    N, C, H, W = x.shape
    assert x.shape[:2] == alpha.shape[:2] == gamma.shape[:2]
    rows, hw = N * C, H * W
    itemsize = jnp.dtype(x.dtype).itemsize
    pack = _sublane_pack(x.dtype)
    num_cores = _num_tensorcores()
    inv_hw = 1.0 / float(hw)

    x_flat = x.reshape(rows, hw)
    ag = jnp.concatenate(
        [alpha.reshape(rows, 1), gamma.reshape(rows, 1)], axis=-1
    ).astype(jnp.float32)                                       # (rows, 2)

    hw128 = ((hw + 127) // 128) * 128
    chunked = force_chunked or (pack * hw128 * itemsize > _MAX_FUSED_BLOCK_BYTES)

    compiler_params = lambda sem: pltpu.CompilerParams(
        dimension_semantics=sem, vmem_limit_bytes=_VMEM_LIMIT_BYTES)

    if not chunked:
        # ---------------- fused single-pass path ----------------
        hw_p = hw128
        if hw_p != hw:
            x_flat = jnp.pad(x_flat, ((0, 0), (0, hw_p - hw)))  # zeros: sum-safe
        tb = _choose_block_rows(rows, hw_p, itemsize, pack, num_cores)
        grid = (pl.cdiv(rows, tb),)

        cost = pl.CostEstimate(
            flops=5 * rows * hw,
            transcendentals=rows,
            bytes_accessed=2 * rows * hw * itemsize + rows * 2 * 4,
        )

        out_flat = pl.pallas_call(
            functools.partial(_adain_fused_kernel, inv_hw=inv_hw),
            out_shape=jax.ShapeDtypeStruct((rows, hw_p), x.dtype),
            grid=grid,
            in_specs=[
                pl.BlockSpec((tb, 2), lambda i: (i, 0)),        # alpha/gamma rows
                pl.BlockSpec((tb, hw_p), lambda i: (i, 0)),     # x rows (lane-dense)
            ],
            out_specs=pl.BlockSpec((tb, hw_p), lambda i: (i, 0)),
            compiler_params=compiler_params(("parallel",)),
            cost_estimate=cost,
        )(ag, x_flat)

        if hw_p != hw:
            out_flat = out_flat[:, :hw]
        return out_flat.reshape(N, C, H, W)

    # ---------------- chunked two-kernel path (large H*W) ----------------
    if chunk_cols is None:
        tc = max(128, ((_TARGET_BLOCK_BYTES // (pack * itemsize)) // 128) * 128)
    else:
        tc = max(128, (chunk_cols // 128) * 128)
    tc = min(tc, hw128)
    hw_p = ((hw + tc - 1) // tc) * tc
    n_chunks = hw_p // tc
    if hw_p != hw:
        x_flat = jnp.pad(x_flat, ((0, 0), (0, hw_p - hw)))      # zeros: sum-safe

    tb = _choose_block_rows(rows, tc, itemsize, pack, num_cores)
    grid = (pl.cdiv(rows, tb), n_chunks)

    # Pass 1: per-row sum and sum-of-squares (chunk axis is the reduction).
    s1, s2 = pl.pallas_call(
        _stats_kernel,
        out_shape=(jax.ShapeDtypeStruct((rows, 1), jnp.float32),
                   jax.ShapeDtypeStruct((rows, 1), jnp.float32)),
        grid=grid,
        in_specs=[pl.BlockSpec((tb, tc), lambda i, j: (i, j))],
        out_specs=(pl.BlockSpec((tb, 1), lambda i, j: (i, 0)),
                   pl.BlockSpec((tb, 1), lambda i, j: (i, 0))),
        compiler_params=compiler_params(("parallel", "arbitrary")),
    )(x_flat)

    # Tiny per-row epilogue in plain JAX: fold stats + alpha/gamma into scale/shift.
    mean = s1 * inv_hw
    var = jnp.maximum(s2 * inv_hw - mean * mean, 0.0)
    inv_std = jax.lax.rsqrt(var + EPS)
    scale = ag[:, 0:1] * inv_std
    shift = ag[:, 1:2] - mean * scale
    ss = jnp.concatenate([scale, shift], axis=-1)               # (rows, 2) f32

    # Pass 2: fully parallel normalize sweep over the same chunks.
    out_flat = pl.pallas_call(
        _norm_kernel,
        out_shape=jax.ShapeDtypeStruct((rows, hw_p), x.dtype),
        grid=grid,
        in_specs=[
            pl.BlockSpec((tb, 2), lambda i, j: (i, 0)),         # scale/shift rows
            pl.BlockSpec((tb, tc), lambda i, j: (i, j)),
        ],
        out_specs=pl.BlockSpec((tb, tc), lambda i, j: (i, j)),
        compiler_params=compiler_params(("parallel", "parallel")),
    )(ss, x_flat)

    if hw_p != hw:
        out_flat = out_flat[:, :hw]
    return out_flat.reshape(N, C, H, W)


def _adain_ref(x, alpha, gamma):
    xf = x.astype(jnp.float32)
    mean = jnp.mean(xf, axis=(2, 3), keepdims=True)
    var = jnp.mean((xf - mean) ** 2, axis=(2, 3), keepdims=True)
    norm = (xf - mean) * jax.lax.rsqrt(var + EPS)
    return (alpha * norm + gamma).astype(x.dtype)


if __name__ == "__main__":
    key = jax.random.PRNGKey(0)
    k1, k2, k3 = jax.random.split(key, 3)

    N, C, H, W = 2, 4, 16, 16
    x = jax.random.normal(k1, (N, C, H, W), dtype=jnp.float32)
    alpha = jax.random.normal(k2, (N, C, 1, 1), dtype=jnp.float32)
    gamma = jax.random.normal(k3, (N, C, 1, 1), dtype=jnp.float32)

    ref = _adain_ref(x, alpha, gamma)

    # Fused single-pass path (default for small/medium H*W).
    out = jax.block_until_ready(adain(x, alpha, gamma))
    assert out.shape == (N, C, H, W)
    assert jnp.allclose(out, ref, atol=1e-4, rtol=1e-4)

    # Exercise the large-H*W spatial-chunk path at a small, deterministic size.
    out_chunked = jax.block_until_ready(
        adain(x, alpha, gamma, force_chunked=True, chunk_cols=128))
    assert jnp.allclose(out_chunked, ref, atol=1e-4, rtol=1e-4)

    # bf16 input exercising the dtype-aware block sizing / sublane packing.
    xb = x.astype(jnp.bfloat16)
    out_bf16 = jax.block_until_ready(adain(xb, alpha, gamma))
    ref_bf16 = _adain_ref(xb, alpha, gamma)
    assert jnp.allclose(out_bf16.astype(jnp.float32),
                        ref_bf16.astype(jnp.float32), atol=1e-1, rtol=1e-1)

    print("KERNEL_OK")
</pallas_src>

<mosaic_0001>
module attributes {stable_mosaic.version = 11 : i64} {
  func.func @_adain_fused_kernel(%arg0: i32, %arg1: memref<8x2xf32, #tpu.memory_space<vmem>>, %arg2: memref<8x256xf32, #tpu.memory_space<vmem>>, %arg3: memref<8x256xf32, #tpu.memory_space<vmem>>) attributes {dimension_semantics = [#tpu.dimension_semantics<parallel>], iteration_bounds = array<i64: 1>, scalar_prefetch = 0 : i64, scratch_operands = 0 : i64, tpu.core_type = #tpu.core_type<tc>, window_params = [{transform_indices = @transform_0, window_bounds = array<i64: 8, 2>}, {transform_indices = @transform_1, window_bounds = array<i64: 8, 256>}, {transform_indices = @transform_2, window_bounds = array<i64: 8, 256>}]} {
    %c0 = arith.constant 0 : index
    %c0_0 = arith.constant 0 : index
    %0 = vector.load %arg2[%c0, %c0_0] : memref<8x256xf32, #tpu.memory_space<vmem>>, vector<8x256xf32>
    %cst = arith.constant dense<0.000000e+00> : vector<8xf32>
    %1 = vector.multi_reduction <add>, %0, %cst [1] : vector<8x256xf32> to vector<8xf32>
    %2 = vector.shape_cast %1 : vector<8xf32> to vector<8x1xf32>
    %cst_1 = arith.constant 3.906250e-03 : f32
    %3 = vector.broadcast %cst_1 : f32 to vector<8x1xf32>
    %4 = arith.mulf %2, %3 : vector<8x1xf32>
    %5 = arith.mulf %0, %0 : vector<8x256xf32>
    %cst_2 = arith.constant dense<0.000000e+00> : vector<8xf32>
    %6 = vector.multi_reduction <add>, %5, %cst_2 [1] : vector<8x256xf32> to vector<8xf32>
    %7 = vector.shape_cast %6 : vector<8xf32> to vector<8x1xf32>
    %cst_3 = arith.constant 3.906250e-03 : f32
    %8 = vector.broadcast %cst_3 : f32 to vector<8x1xf32>
    %9 = arith.mulf %7, %8 : vector<8x1xf32>
    %10 = arith.mulf %4, %4 : vector<8x1xf32>
    %11 = arith.subf %9, %10 : vector<8x1xf32>
    %cst_4 = arith.constant 0.000000e+00 : f32
    %12 = vector.broadcast %cst_4 : f32 to vector<8x1xf32>
    %13 = arith.maximumf %11, %12 : vector<8x1xf32>
    %cst_5 = arith.constant 9.99999974E-6 : f32
    %14 = vector.broadcast %cst_5 : f32 to vector<8x1xf32>
    %15 = arith.addf %13, %14 : vector<8x1xf32>
    %16 = math.rsqrt %15 : vector<8x1xf32>
    %c0_6 = arith.constant 0 : index
    %c0_7 = arith.constant 0 : index
    %17 = vector.load %arg1[%c0_6, %c0_7] : memref<8x2xf32, #tpu.memory_space<vmem>>, vector<8x1xf32>
    %c0_8 = arith.constant 0 : index
    %c1 = arith.constant 1 : index
    %18 = vector.load %arg1[%c0_8, %c1] : memref<8x2xf32, #tpu.memory_space<vmem>>, vector<8x1xf32>
    %19 = arith.mulf %17, %16 : vector<8x1xf32>
    %20 = arith.mulf %4, %19 : vector<8x1xf32>
    %21 = arith.subf %18, %20 : vector<8x1xf32>
    %22 = vector.broadcast %19 : vector<8x1xf32> to vector<8x256xf32>
    %23 = arith.mulf %0, %22 : vector<8x256xf32>
    %24 = vector.broadcast %21 : vector<8x1xf32> to vector<8x256xf32>
    %25 = arith.addf %23, %24 : vector<8x256xf32>
    %c0_9 = arith.constant 0 : index
    %c0_10 = arith.constant 0 : index
    %26 = vector.load %arg3[%c0_9, %c0_10] : memref<8x256xf32, #tpu.memory_space<vmem>>, vector<8x256xf32>
    tpu.vector_store %arg3[%c0_9, %c0_10], %25 {strides = array<i32>} : memref<8x256xf32, #tpu.memory_space<vmem>>, vector<8x256xf32>,
    return
  }
  func.func @transform_0(%arg0: i32) -> (i32, i32) {
    %c0_i32 = arith.constant 0 : i32
    %c0_i32_0 = arith.constant 0 : i32
    return %arg0, %c0_i32 : i32, i32
  }
  func.func @transform_1(%arg0: i32) -> (i32, i32) {
    %c0_i32 = arith.constant 0 : i32
    %c0_i32_0 = arith.constant 0 : i32
    return %arg0, %c0_i32 : i32, i32
  }
  func.func @transform_2(%arg0: i32) -> (i32, i32) {
    %c0_i32 = arith.constant 0 : i32
    %c0_i32_0 = arith.constant 0 : i32
    return %arg0, %c0_i32 : i32, i32
  }
}

</mosaic_0001>

<llo_original>
// kernel: tpu_custom_call.1
$region0: #{tpu_custom_call.1}
  #allocation0 [shape = 'u32[]', space=smem, size = 0x4, offset = 0x4, fixed_abs, tag = 'smem constant byte address 0x4 - core index']
  #allocation1 [shape = 'u32[144,128]{1,0:T(1,128)}', space=vmem, size = 0x12000, scoped, tag = 'internal scratch']
  %s0 = inlined_call_operand.vmem [shape: f32[8,2], index: 0, kind: input, shape index: {}]
  %s1 = inlined_call_operand.hbm [shape: f32[8,256], index: 1, kind: input, shape index: {}]
  %s2 = inlined_call_operand.hbm [shape: f32[8,256], index: 2, kind: output, shape index: {}]
  %s3 = sld [smem:[#allocation0]]
  $region22: #{tpu_custom_call.1} parent=0
    _
  %s5 = ssub.s32 1, %s3
  %s6 = scalar_select 0, %s5, %s3
  $region1: #{tpu_custom_call.1} parent=0
    #allocation2 [shape = 'u8[8192]{0}', space=vmem, size = 0x2000, scoped, tag = 'input window, operand 1, single buffered']
    #allocation3 [shape = 's32[1]{0}', space=sflag, size = 0x4, scoped, tag = 'scoped memory for tpu_custom_call.1']
    #allocation4 [shape = 's32[1]{0}', space=sflag, size = 0x4, scoped, tag = 'scoped memory for tpu_custom_call.1']
    #allocation5 [shape = 'u8[8192]{0}', space=vmem, size = 0x2000, scoped, tag = 'output window, operand 0, single buffered']
    %7 = vsyncpa [#allocation3], 0
    %8 = vsyncpa [#allocation4], 0
    // Predicated region
    $region2: #{tpu_custom_call.1} parent=1 // pred_check
      _
    $region3: #{tpu_custom_call.1} parent=1 // pred_check_branch
      %10 = sbr.rel (0) target = $region5
    $region4: #{tpu_custom_call.1} parent=1 // pred_region
      _
    $region5: #{tpu_custom_call.1} parent=1 // pred_fallthru
      _
    // Predicated region
    $region6: #{tpu_custom_call.1} parent=1 // pred_check
      _
    $region7: #{tpu_custom_call.1} parent=1 // pred_check_branch
      %12 = sbr.rel (0) target = $region9
    $region8: #{tpu_custom_call.1} parent=1 // pred_region
      %s14 = ssub.s32 256, 256
      %15 = vsyncadd [#allocation3], %s14
      %s17 = sshll.u32 [#allocation2], 4
      %s18 = int_to_ptr.vmem [resolvable:$true] %s17
      %20 = dma.hbm_to_vmem [thread:$0]  %s1, 256, %s18, [#allocation3]
    $region9: #{tpu_custom_call.1} parent=1 // pred_fallthru
      _
    // Predicated region
    $region10: #{tpu_custom_call.1} parent=1 // pred_check
      _
    $region11: #{tpu_custom_call.1} parent=1 // pred_check_branch
      %22 = sbr.rel (0) target = $region13
    $region12: #{tpu_custom_call.1} parent=1 // pred_region
      %23 = dma.done [#allocation3], 256
    $region13: #{tpu_custom_call.1} parent=1 // pred_fallthru
      _
    %v24 = vld [vmem:[#allocation2] sm:$0xff]
    %v25 = vld [vmem:[#allocation2 + $0x8] sm:$0xff]
    %v26 = vadd.f32 %v24, %v25
    %27 = vadd.xlane.f32.xlu0 %v26
    %v28 = vpop.xlane.xlu0 %27
    %v29 = vmul.f32 %v28, 0.00390625
    %v30 = vmul.f32 %v24, %v24
    %v31 = vmul.f32 %v25, %v25
    %v32 = vadd.f32 %v30, %v31
    %33 = vadd.xlane.f32.xlu0 %v32
    %v34 = vpop.xlane.xlu0 %33
    %v35 = vmul.f32 %v34, 0.00390625
    %v36 = vmul.f32 %v29, %v29
    %v37 = vsub.f32 %v35, %v36
    %v38 = vmax.f32 %v37, 0.0
    %v39 = vadd.f32 %v38, 1e-05
    %v40 = vrsqrt.pop %v39
    %v41 = vld [vmem:[%s0] sm:$0xff]
    %v42 = vmul.f32 %v41, %v40
    %v43 = vmul.f32 %v29, %v42
    %45 = vrot.lane.b32.xlu0 %v43, 1
    %v46 = vpop.permute.xlu0 %45
    %v48 = vsub.f32 %v41, %v46
    %50 = vset.pattern.permute.xlu0 0
    %51 = vperm.xlu0 %50, %v42
    %v52 = vpop.permute.xlu0 %51
    %v54 = vmul.f32 %v24, %v52
    %v55 = vmul.f32 %v25, %v52
    %57 = vset.pattern.permute.xlu0 1
    %58 = vperm.xlu0 %57, %v48
    %v59 = vpop.permute.xlu0 %58
    %v61 = vadd.f32 %v54, %v59
    %v62 = vadd.f32 %v55, %v59
    %63 = vst [vmem:[#allocation5] sm:$0xff] %v61
    %64 = vst [vmem:[#allocation5 + $0x8] sm:$0xff] %v62
    // Predicated region
    $region14: #{tpu_custom_call.1} parent=1 // pred_check
      _
    $region15: #{tpu_custom_call.1} parent=1 // pred_check_branch
      %66 = sbr.rel (0) target = $region17
    $region16: #{tpu_custom_call.1} parent=1 // pred_region
      %s68 = ssub.s32 256, 256
      %69 = vsyncadd [#allocation4], %s68
      %s71 = sshll.u32 [#allocation5], 4
      %s72 = int_to_ptr.vmem [resolvable:$true] %s71
      %74 = dma.vmem_to_hbm [thread:$0]  %s72, 256, %s2, [#allocation4]
    $region17: #{tpu_custom_call.1} parent=1 // pred_fallthru
      _
    // Predicated region
    $region18: #{tpu_custom_call.1} parent=1 // pred_check
      _
    $region19: #{tpu_custom_call.1} parent=1 // pred_check_branch
      %76 = sbr.rel (0) target = $region21
    $region20: #{tpu_custom_call.1} parent=1 // pred_region
      %77 = dma.done [#allocation4], 256
    $region21: #{tpu_custom_call.1} parent=1 // pred_fallthru
      _
    %78 = vsyncpa [#allocation3], 1
    %79 = vsyncpa [#allocation4], 1

</llo_original>
